<compile_context>
chip_gen: v7x
topology: tpu7x:2x2x1
jax: 0.10.0
libtpu: 0.0.40
codegen_flags: <defaults>
</compile_context>

<pallas_src>
import jax
import jax.numpy as jnp
import numpy as np
from jax import lax
from jax.experimental import pallas as pl
from jax.experimental.pallas import tpu as pltpu

GP = 32            # padded lanes per LSTM gate (H=10 -> 32)
NG = 4             # gates: i, f, o, g
GW = NG * GP       # 128: all four gates packed into a single 128-lane tile


# ----------------------------------------------------------------------------
# Kernel
# ----------------------------------------------------------------------------
def power_kernel(x_ref,        # (S, TB, 1)   time-leading input block, f32
                 w1_ref,       # (1, 256)     Linear(1,256) weight (row), f32
                 b1_ref,       # (1, 256)
                 wg_ref,       # (256, GW)    fused w2@w3@w_ih, gates [i|f|o|g], bf16
                 bg_ref,       # (1, GW)      fused bias, f32
                 whh_ref,      # (GP, GW)     padded recurrent weight, bf16
                 wfc_ref,      # (1, GP)      padded final fc weight (row), f32
                 bfc_ref,      # (1, 1)       final fc bias, SMEM scalar
                 out_ref,      # (1, 1, TB)   lane-dense output row
                 gx_ref):      # (S, TB, GW)  VMEM scratch: per-step input gates
    S, TB, _ = x_ref.shape

    # ---- Linear(1,256) + ReLU as a VPU broadcast FMA (no K=1 MXU matmul) ----
    x = x_ref[...].reshape(S * TB, 1)                        # rows ordered t*TB + b
    h1 = jnp.maximum(x * w1_ref[...] + b1_ref[...], 0.0)     # (S*TB, 256), f32

    # ---- fused Linear(256,128) -> Linear(128,1) -> LSTM input projection ----
    # One MXU matmul, bf16 operands, f32 accumulation, N = 128 (one lane tile).
    gx = jnp.dot(h1.astype(jnp.bfloat16), wg_ref[...],
                 preferred_element_type=jnp.float32) + bg_ref[...]       # (S*TB, GW)
    # TB % 8 == 0 (guaranteed by the wrapper) -> layout-trivial split of the leading dim.
    gx_ref[...] = gx.reshape(S, TB, GW)

    whh = whh_ref[...]                                       # (GP, GW) bf16, tiny

    # ---- LSTM recurrence (1 layer); gates packed [i|f|o|g], GP lanes each ----
    def step(t, carry):
        h_t, c_t = carry                                     # (TB, GP) f32 each
        g = gx_ref[t] + jnp.dot(h_t.astype(jnp.bfloat16), whh,
                                preferred_element_type=jnp.float32)      # (TB, GW)
        sig = jax.nn.sigmoid(g[:, :3 * GP])                  # one EUP pass over i|f|o
        g_g = jnp.tanh(g[:, 3 * GP:])                        # one EUP pass for g
        i_g = sig[:, 0 * GP:1 * GP]
        f_g = sig[:, 1 * GP:2 * GP]                          # lane realign -> XLU (cheap)
        o_g = sig[:, 2 * GP:3 * GP]
        c_t = f_g * c_t + i_g * g_g
        h_t = o_g * jnp.tanh(c_t)
        return h_t, c_t

    h0 = jnp.zeros((TB, GP), jnp.float32)
    c0 = jnp.zeros((TB, GP), jnp.float32)
    h_t, _ = lax.fori_loop(0, S, step, (h0, c0),
                           unroll=True if S <= 16 else 2)

    # ---- final Linear(H, 1): VPU multiply + lane reduce; lane-dense store ----
    out = jnp.sum(h_t * wfc_ref[...], axis=-1) + bfc_ref[0, 0]           # (TB,)
    out_ref[...] = out.reshape(1, 1, TB)


# ----------------------------------------------------------------------------
# Host-side weight preparation (algebraic fusion, gate reorder, 32-lane gate packing)
# ----------------------------------------------------------------------------
def prepare_params(p):
    H = p["w_hh"].shape[0]
    assert H <= GP, "gate packing assumes hidden_dim <= 32"
    assert p["w_fc"].shape[1] == 1, "kernel final-fc path assumes output_dim == 1"

    # Fuse Linear(256,128) -> Linear(128,1) -> LSTM input projection (no nonlinearity between).
    w_fused = p["w2"] @ p["w3"] @ p["w_ih"]                                      # (256, 4H)
    b_fused = p["b2"] @ p["w3"] @ p["w_ih"] + p["b3"] @ p["w_ih"] + p["b_lstm"]  # (1, 4H)

    # Reorder PyTorch gate order [i, f, g, o] -> kernel order [i, f, o, g].
    perm = jnp.concatenate([jnp.arange(0, H), jnp.arange(H, 2 * H),
                            jnp.arange(3 * H, 4 * H), jnp.arange(2 * H, 3 * H)])
    w_fused = w_fused[:, perm]
    b_fused = b_fused[:, perm]
    w_hh = p["w_hh"][:, perm]

    def pad_gate_cols(m):
        # (..., 4H) -> (..., GW); gate k's real columns land in lanes [k*GP, k*GP+H).
        # Padded columns are EXACTLY zero (padded-lane invariant: c/h padding stays 0).
        blocks = [jnp.pad(m[..., k * H:(k + 1) * H],
                          [(0, 0)] * (m.ndim - 1) + [(0, GP - H)])
                  for k in range(NG)]
        return jnp.concatenate(blocks, axis=-1)

    wg = pad_gate_cols(w_fused).astype(jnp.bfloat16)              # (256, GW) bf16
    bg = pad_gate_cols(b_fused)                                   # (1, GW)   f32
    whh = jnp.pad(pad_gate_cols(w_hh),
                  ((0, GP - H), (0, 0))).astype(jnp.bfloat16)     # (GP, GW)  bf16
    wfc = jnp.pad(p["w_fc"].T, ((0, 0), (0, GP - H)))             # (1, GP)   f32

    return {"w1": p["w1"], "b1": p["b1"], "wg": wg, "bg": bg,
            "whh": whh, "wfc": wfc, "bfc": p["b_fc"]}


# ----------------------------------------------------------------------------
# Wrapper
# ----------------------------------------------------------------------------
def _pick_batch_tile(Bp, S):
    """Bp is a multiple of 8.  Aim for S*TB >= 256 fused-matmul rows, keep >= 2 grid
    steps when possible (v7x megacore), cap the tile at 512 rows."""
    divs = [d for d in range(8, Bp + 1, 8) if Bp % d == 0]
    target = max(-(-256 // S), 8)
    good = [d for d in divs if Bp // d >= 2 and d <= 512] or divs
    ge = [d for d in good if d >= target]
    return min(ge) if ge else max(good)


def power_forward(x, kp, *, batch_tile=None):
    B, S, F = x.shape
    assert F == 1

    # Pad batch to a multiple of 8 so every block is sublane-aligned (all in-kernel
    # reshapes become layout-trivial); padded rows are sliced off at the end.
    Bp = -(-B // 8) * 8
    if Bp != B:
        x = jnp.concatenate([x, jnp.zeros((Bp - B, S, 1), x.dtype)], axis=0)

    TB = batch_tile if batch_tile is not None else _pick_batch_tile(Bp, S)
    assert Bp % TB == 0 and TB % 8 == 0

    # Time-leading layout so the kernel's per-step access is a leading-index slice.
    x_t = jnp.transpose(x, (1, 0, 2))  # (S, Bp, 1)

    grid = (Bp // TB,)
    in_specs = [
        pl.BlockSpec((S, TB, 1), lambda i: (0, i, 0)),                # x (time-leading)
        pl.BlockSpec((1, 256), lambda i: (0, 0)),                     # w1
        pl.BlockSpec((1, 256), lambda i: (0, 0)),                     # b1
        pl.BlockSpec((256, GW), lambda i: (0, 0)),                    # wg (bf16)
        pl.BlockSpec((1, GW), lambda i: (0, 0)),                      # bg
        pl.BlockSpec((GP, GW), lambda i: (0, 0)),                     # whh (bf16)
        pl.BlockSpec((1, GP), lambda i: (0, 0)),                      # wfc
        pl.BlockSpec(memory_space=pltpu.MemorySpace.SMEM),            # b_fc scalar
    ]
    out_specs = pl.BlockSpec((1, 1, TB), lambda i: (i, 0, 0))         # lane-dense row

    out3 = pl.pallas_call(
        power_kernel,
        out_shape=jax.ShapeDtypeStruct((Bp // TB, 1, TB), jnp.float32),
        grid=grid,
        in_specs=in_specs,
        out_specs=out_specs,
        scratch_shapes=[pltpu.VMEM((S, TB, GW), jnp.float32)],
        compiler_params=pltpu.CompilerParams(
            dimension_semantics=("parallel",)),   # shards batch across v7x's 2 TCs
    )(x_t, kp["w1"], kp["b1"], kp["wg"], kp["bg"], kp["whh"], kp["wfc"], kp["bfc"])

    return out3.reshape(Bp, 1)[:B]


# ----------------------------------------------------------------------------
# Parameters (PyTorch-style init, weights stored transposed as (in, out))
# ----------------------------------------------------------------------------
def make_params(key, hidden_dim=10, output_dim=1):
    ks = jax.random.split(key, 12)

    def u(k, shape, fan_in):
        bound = 1.0 / np.sqrt(fan_in)
        return jax.random.uniform(k, shape, jnp.float32, -bound, bound)

    H = hidden_dim
    return {
        # Linear(1, 256)
        "w1": u(ks[0], (1, 256), 1), "b1": u(ks[1], (1, 256), 1),
        # Linear(256, 128)
        "w2": u(ks[2], (256, 128), 256), "b2": u(ks[3], (1, 128), 256),
        # Linear(128, 1)
        "w3": u(ks[4], (128, 1), 128), "b3": u(ks[5], (1, 1), 128),
        # LSTM(input=1, hidden=H): weight_ih^T (1,4H), weight_hh^T (H,4H), b_ih + b_hh
        "w_ih": u(ks[6], (1, 4 * H), H),
        "w_hh": u(ks[7], (H, 4 * H), H),
        "b_lstm": u(ks[8], (1, 4 * H), H) + u(ks[9], (1, 4 * H), H),
        # fc: Linear(H, output_dim)
        "w_fc": u(ks[10], (H, output_dim), H), "b_fc": u(ks[11], (1, output_dim), H),
    }


def power_ref(x, p):
    """Pure-JAX reference of the same forward pass (unfused, PyTorch gate order)."""
    B, S, _ = x.shape
    H = p["w_hh"].shape[0]
    h = x.reshape(B * S, 1)
    h = jnp.maximum(h @ p["w1"] + p["b1"], 0.0)
    h = h @ p["w2"] + p["b2"]
    h = h @ p["w3"] + p["b3"]
    gates_x = (h @ p["w_ih"] + p["b_lstm"]).reshape(B, S, 4 * H)
    h_t = jnp.zeros((B, H), jnp.float32)
    c_t = jnp.zeros((B, H), jnp.float32)
    for t in range(S):
        g = gates_x[:, t, :] + h_t @ p["w_hh"]
        i_g = jax.nn.sigmoid(g[:, 0 * H:1 * H])
        f_g = jax.nn.sigmoid(g[:, 1 * H:2 * H])
        g_g = jnp.tanh(g[:, 2 * H:3 * H])
        o_g = jax.nn.sigmoid(g[:, 3 * H:4 * H])
        c_t = f_g * c_t + i_g * g_g
        h_t = o_g * jnp.tanh(c_t)
    return h_t @ p["w_fc"] + p["b_fc"]


if __name__ == "__main__":
    hidden_dim, output_dim = 10, 1
    key = jax.random.PRNGKey(0)
    k_x1, k_x2, k_p = jax.random.split(key, 3)
    params = make_params(k_p, hidden_dim, output_dim)
    kparams = prepare_params(params)

    # Small case (batch gets padded 2 -> 8, single grid step).
    B, S = 2, 8
    x = jax.random.normal(k_x1, (B, S, 1), jnp.float32)
    out = power_forward(x, kparams)
    jax.block_until_ready(out)
    assert out.shape == (B, output_dim)
    ref = power_ref(x, params)
    # bf16 MXU operands (f32 accumulation) -> ~1e-3 level differences.
    np.testing.assert_allclose(np.asarray(out), np.asarray(ref), rtol=2e-2, atol=2e-2)

    # Larger batch exercising the multi-step grid + lane-dense output path.
    B2, S2 = 64, 8
    x2 = jax.random.normal(k_x2, (B2, S2, 1), jnp.float32)
    out2 = power_forward(x2, kparams)
    jax.block_until_ready(out2)
    assert out2.shape == (B2, output_dim)
    ref2 = power_ref(x2, params)
    np.testing.assert_allclose(np.asarray(out2), np.asarray(ref2), rtol=2e-2, atol=2e-2)

    print("KERNEL_OK")
</pallas_src>

<mosaic_0001>
module attributes {stable_mosaic.version = 11 : i64} {
  func.func @power_kernel(%arg0: i32, %arg1: memref<8x8x1xf32, #tpu.memory_space<vmem>>, %arg2: memref<1x256xf32, #tpu.memory_space<vmem>>, %arg3: memref<1x256xf32, #tpu.memory_space<vmem>>, %arg4: memref<256x128xbf16, #tpu.memory_space<vmem>>, %arg5: memref<1x128xf32, #tpu.memory_space<vmem>>, %arg6: memref<32x128xbf16, #tpu.memory_space<vmem>>, %arg7: memref<1x32xf32, #tpu.memory_space<vmem>>, %arg8: memref<1x1xf32, #tpu.memory_space<smem>>, %arg9: memref<1x1x8xf32, #tpu.memory_space<vmem>>, %arg10: memref<8x8x128xf32, #tpu.memory_space<vmem>>) attributes {dimension_semantics = [#tpu.dimension_semantics<parallel>], iteration_bounds = array<i64: 1>, scalar_prefetch = 0 : i64, scratch_operands = 1 : i64, tpu.core_type = #tpu.core_type<tc>, window_params = [{transform_indices = @transform_0, window_bounds = array<i64: 8, 8, 1>}, {pipeline_mode = #tpu.pipeline_mode<synchronous>, transform_indices = @transform_1, window_bounds = array<i64: 1, 256>}, {pipeline_mode = #tpu.pipeline_mode<synchronous>, transform_indices = @transform_2, window_bounds = array<i64: 1, 256>}, {pipeline_mode = #tpu.pipeline_mode<synchronous>, transform_indices = @transform_3, window_bounds = array<i64: 256, 128>}, {pipeline_mode = #tpu.pipeline_mode<synchronous>, transform_indices = @transform_4, window_bounds = array<i64: 1, 128>}, {pipeline_mode = #tpu.pipeline_mode<synchronous>, transform_indices = @transform_5, window_bounds = array<i64: 32, 128>}, {pipeline_mode = #tpu.pipeline_mode<synchronous>, transform_indices = @transform_6, window_bounds = array<i64: 1, 32>}, {transform_indices = @transform_7, window_bounds = array<i64: 1, 1>}, {transform_indices = @transform_8, window_bounds = array<i64: 1, 1, 8>}]} {
    %c0 = arith.constant 0 : index
    %c0_0 = arith.constant 0 : index
    %c0_1 = arith.constant 0 : index
    %0 = vector.load %arg1[%c0, %c0_0, %c0_1] : memref<8x8x1xf32, #tpu.memory_space<vmem>>, vector<8x8x1xf32>
    %1 = vector.shape_cast %0 : vector<8x8x1xf32> to vector<64x1xf32>
    %c0_2 = arith.constant 0 : index
    %c0_3 = arith.constant 0 : index
    %2 = vector.load %arg2[%c0_2, %c0_3] : memref<1x256xf32, #tpu.memory_space<vmem>>, vector<1x256xf32>
    %3 = vector.broadcast %1 : vector<64x1xf32> to vector<64x256xf32>
    %4 = vector.broadcast %2 : vector<1x256xf32> to vector<64x256xf32>
    %5 = arith.mulf %3, %4 : vector<64x256xf32>
    %c0_4 = arith.constant 0 : index
    %c0_5 = arith.constant 0 : index
    %6 = vector.load %arg3[%c0_4, %c0_5] : memref<1x256xf32, #tpu.memory_space<vmem>>, vector<1x256xf32>
    %7 = vector.broadcast %6 : vector<1x256xf32> to vector<64x256xf32>
    %8 = arith.addf %5, %7 : vector<64x256xf32>
    %cst = arith.constant 0.000000e+00 : f32
    %9 = vector.broadcast %cst : f32 to vector<64x256xf32>
    %10 = arith.maximumf %8, %9 : vector<64x256xf32>
    %11 = arith.truncf %10 : vector<64x256xf32> to vector<64x256xbf16>
    %c0_6 = arith.constant 0 : index
    %c0_7 = arith.constant 0 : index
    %12 = vector.load %arg4[%c0_6, %c0_7] : memref<256x128xbf16, #tpu.memory_space<vmem>>, vector<256x128xbf16>
    %cst_8 = arith.constant dense<0.000000e+00> : vector<64x128xf32>
    %13 = tpu.matmul %11, %12, %cst_8 {dimension_numbers = #tpu.dot_dimension_numbers<[1], [0], [0], [1], [0, 0, 1, 1], [], []>} : vector<64x256xbf16>, vector<256x128xbf16>, vector<64x128xf32> -> vector<64x128xf32>
    %c0_9 = arith.constant 0 : index
    %c0_10 = arith.constant 0 : index
    %14 = vector.load %arg5[%c0_9, %c0_10] : memref<1x128xf32, #tpu.memory_space<vmem>>, vector<1x128xf32>
    %15 = vector.broadcast %14 : vector<1x128xf32> to vector<64x128xf32>
    %16 = arith.addf %13, %15 : vector<64x128xf32>
    %17 = vector.shape_cast %16 : vector<64x128xf32> to vector<8x8x128xf32>
    %c0_11 = arith.constant 0 : index
    %c0_12 = arith.constant 0 : index
    %c0_13 = arith.constant 0 : index
    %18 = vector.load %arg10[%c0_11, %c0_12, %c0_13] : memref<8x8x128xf32, #tpu.memory_space<vmem>>, vector<8x8x128xf32>
    tpu.vector_store %arg10[%c0_11, %c0_12, %c0_13], %17 {strides = array<i32>} : memref<8x8x128xf32, #tpu.memory_space<vmem>>, vector<8x8x128xf32>,
    %c0_14 = arith.constant 0 : index
    %c0_15 = arith.constant 0 : index
    %19 = vector.load %arg6[%c0_14, %c0_15] : memref<32x128xbf16, #tpu.memory_space<vmem>>, vector<32x128xbf16>
    %cst_16 = arith.constant 0.000000e+00 : f32
    %20 = vector.broadcast %cst_16 : f32 to vector<8x32xf32>
    %cst_17 = arith.constant 0.000000e+00 : f32
    %21 = vector.broadcast %cst_17 : f32 to vector<8x32xf32>
    %c0_i32 = arith.constant 0 : i32
    %22 = arith.index_cast %c0_i32 : i32 to index
    %c0_18 = arith.constant 0 : index
    %c0_19 = arith.constant 0 : index
    %23 = vector.load %arg10[%22, %c0_18, %c0_19] : memref<8x8x128xf32, #tpu.memory_space<vmem>>, vector<1x8x128xf32>
    %24 = vector.shape_cast %23 : vector<1x8x128xf32> to vector<8x128xf32>
    %25 = arith.truncf %20 : vector<8x32xf32> to vector<8x32xbf16>
    %cst_20 = arith.constant dense<0.000000e+00> : vector<8x128xf32>
    %26 = tpu.matmul %25, %19, %cst_20 {dimension_numbers = #tpu.dot_dimension_numbers<[1], [0], [0], [1], [0, 0, 1, 1], [], []>} : vector<8x32xbf16>, vector<32x128xbf16>, vector<8x128xf32> -> vector<8x128xf32>
    %27 = arith.addf %24, %26 : vector<8x128xf32>
    %28 = vector.extract_strided_slice %27 {offsets = [0, 0], sizes = [8, 96], strides = [1, 1]} : vector<8x128xf32> to vector<8x96xf32>
    %29 = arith.negf %28 : vector<8x96xf32>
    %30 = math.exp %29 : vector<8x96xf32>
    %cst_21 = arith.constant 1.000000e+00 : f32
    %31 = vector.broadcast %cst_21 : f32 to vector<8x96xf32>
    %32 = arith.addf %31, %30 : vector<8x96xf32>
    %33 = arith.divf %31, %32 : vector<8x96xf32>
    %34 = vector.extract_strided_slice %27 {offsets = [0, 96], sizes = [8, 32], strides = [1, 1]} : vector<8x128xf32> to vector<8x32xf32>
    %35 = math.tanh %34 : vector<8x32xf32>
    %36 = vector.extract_strided_slice %33 {offsets = [0, 0], sizes = [8, 32], strides = [1, 1]} : vector<8x96xf32> to vector<8x32xf32>
    %37 = vector.extract_strided_slice %33 {offsets = [0, 32], sizes = [8, 32], strides = [1, 1]} : vector<8x96xf32> to vector<8x32xf32>
    %38 = vector.extract_strided_slice %33 {offsets = [0, 64], sizes = [8, 32], strides = [1, 1]} : vector<8x96xf32> to vector<8x32xf32>
    %39 = arith.mulf %37, %21 : vector<8x32xf32>
    %40 = arith.mulf %36, %35 : vector<8x32xf32>
    %41 = arith.addf %39, %40 : vector<8x32xf32>
    %42 = math.tanh %41 : vector<8x32xf32>
    %43 = arith.mulf %38, %42 : vector<8x32xf32>
    %c1_i32 = arith.constant 1 : i32
    %44 = arith.index_cast %c1_i32 : i32 to index
    %c0_22 = arith.constant 0 : index
    %c0_23 = arith.constant 0 : index
    %45 = vector.load %arg10[%44, %c0_22, %c0_23] : memref<8x8x128xf32, #tpu.memory_space<vmem>>, vector<1x8x128xf32>
    %46 = vector.shape_cast %45 : vector<1x8x128xf32> to vector<8x128xf32>
    %47 = arith.truncf %43 : vector<8x32xf32> to vector<8x32xbf16>
    %cst_24 = arith.constant dense<0.000000e+00> : vector<8x128xf32>
    %48 = tpu.matmul %47, %19, %cst_24 {dimension_numbers = #tpu.dot_dimension_numbers<[1], [0], [0], [1], [0, 0, 1, 1], [], []>} : vector<8x32xbf16>, vector<32x128xbf16>, vector<8x128xf32> -> vector<8x128xf32>
    %49 = arith.addf %46, %48 : vector<8x128xf32>
    %50 = vector.extract_strided_slice %49 {offsets = [0, 0], sizes = [8, 96], strides = [1, 1]} : vector<8x128xf32> to vector<8x96xf32>
    %51 = arith.negf %50 : vector<8x96xf32>
    %52 = math.exp %51 : vector<8x96xf32>
    %cst_25 = arith.constant 1.000000e+00 : f32
    %53 = vector.broadcast %cst_25 : f32 to vector<8x96xf32>
    %54 = arith.addf %53, %52 : vector<8x96xf32>
    %55 = arith.divf %53, %54 : vector<8x96xf32>
    %56 = vector.extract_strided_slice %49 {offsets = [0, 96], sizes = [8, 32], strides = [1, 1]} : vector<8x128xf32> to vector<8x32xf32>
    %57 = math.tanh %56 : vector<8x32xf32>
    %58 = vector.extract_strided_slice %55 {offsets = [0, 0], sizes = [8, 32], strides = [1, 1]} : vector<8x96xf32> to vector<8x32xf32>
    %59 = vector.extract_strided_slice %55 {offsets = [0, 32], sizes = [8, 32], strides = [1, 1]} : vector<8x96xf32> to vector<8x32xf32>
    %60 = vector.extract_strided_slice %55 {offsets = [0, 64], sizes = [8, 32], strides = [1, 1]} : vector<8x96xf32> to vector<8x32xf32>
    %61 = arith.mulf %59, %41 : vector<8x32xf32>
    %62 = arith.mulf %58, %57 : vector<8x32xf32>
    %63 = arith.addf %61, %62 : vector<8x32xf32>
    %64 = math.tanh %63 : vector<8x32xf32>
    %65 = arith.mulf %60, %64 : vector<8x32xf32>
    %c2_i32 = arith.constant 2 : i32
    %66 = arith.index_cast %c2_i32 : i32 to index
    %c0_26 = arith.constant 0 : index
    %c0_27 = arith.constant 0 : index
    %67 = vector.load %arg10[%66, %c0_26, %c0_27] : memref<8x8x128xf32, #tpu.memory_space<vmem>>, vector<1x8x128xf32>
    %68 = vector.shape_cast %67 : vector<1x8x128xf32> to vector<8x128xf32>
    %69 = arith.truncf %65 : vector<8x32xf32> to vector<8x32xbf16>
    %cst_28 = arith.constant dense<0.000000e+00> : vector<8x128xf32>
    %70 = tpu.matmul %69, %19, %cst_28 {dimension_numbers = #tpu.dot_dimension_numbers<[1], [0], [0], [1], [0, 0, 1, 1], [], []>} : vector<8x32xbf16>, vector<32x128xbf16>, vector<8x128xf32> -> vector<8x128xf32>
    %71 = arith.addf %68, %70 : vector<8x128xf32>
    %72 = vector.extract_strided_slice %71 {offsets = [0, 0], sizes = [8, 96], strides = [1, 1]} : vector<8x128xf32> to vector<8x96xf32>
    %73 = arith.negf %72 : vector<8x96xf32>
    %74 = math.exp %73 : vector<8x96xf32>
    %cst_29 = arith.constant 1.000000e+00 : f32
    %75 = vector.broadcast %cst_29 : f32 to vector<8x96xf32>
    %76 = arith.addf %75, %74 : vector<8x96xf32>
    %77 = arith.divf %75, %76 : vector<8x96xf32>
    %78 = vector.extract_strided_slice %71 {offsets = [0, 96], sizes = [8, 32], strides = [1, 1]} : vector<8x128xf32> to vector<8x32xf32>
    %79 = math.tanh %78 : vector<8x32xf32>
    %80 = vector.extract_strided_slice %77 {offsets = [0, 0], sizes = [8, 32], strides = [1, 1]} : vector<8x96xf32> to vector<8x32xf32>
    %81 = vector.extract_strided_slice %77 {offsets = [0, 32], sizes = [8, 32], strides = [1, 1]} : vector<8x96xf32> to vector<8x32xf32>
    %82 = vector.extract_strided_slice %77 {offsets = [0, 64], sizes = [8, 32], strides = [1, 1]} : vector<8x96xf32> to vector<8x32xf32>
    %83 = arith.mulf %81, %63 : vector<8x32xf32>
    %84 = arith.mulf %80, %79 : vector<8x32xf32>
    %85 = arith.addf %83, %84 : vector<8x32xf32>
    %86 = math.tanh %85 : vector<8x32xf32>
    %87 = arith.mulf %82, %86 : vector<8x32xf32>
    %c3_i32 = arith.constant 3 : i32
    %88 = arith.index_cast %c3_i32 : i32 to index
    %c0_30 = arith.constant 0 : index
    %c0_31 = arith.constant 0 : index
    %89 = vector.load %arg10[%88, %c0_30, %c0_31] : memref<8x8x128xf32, #tpu.memory_space<vmem>>, vector<1x8x128xf32>
    %90 = vector.shape_cast %89 : vector<1x8x128xf32> to vector<8x128xf32>
    %91 = arith.truncf %87 : vector<8x32xf32> to vector<8x32xbf16>
    %cst_32 = arith.constant dense<0.000000e+00> : vector<8x128xf32>
    %92 = tpu.matmul %91, %19, %cst_32 {dimension_numbers = #tpu.dot_dimension_numbers<[1], [0], [0], [1], [0, 0, 1, 1], [], []>} : vector<8x32xbf16>, vector<32x128xbf16>, vector<8x128xf32> -> vector<8x128xf32>
    %93 = arith.addf %90, %92 : vector<8x128xf32>
    %94 = vector.extract_strided_slice %93 {offsets = [0, 0], sizes = [8, 96], strides = [1, 1]} : vector<8x128xf32> to vector<8x96xf32>
    %95 = arith.negf %94 : vector<8x96xf32>
    %96 = math.exp %95 : vector<8x96xf32>
    %cst_33 = arith.constant 1.000000e+00 : f32
    %97 = vector.broadcast %cst_33 : f32 to vector<8x96xf32>
    %98 = arith.addf %97, %96 : vector<8x96xf32>
    %99 = arith.divf %97, %98 : vector<8x96xf32>
    %100 = vector.extract_strided_slice %93 {offsets = [0, 96], sizes = [8, 32], strides = [1, 1]} : vector<8x128xf32> to vector<8x32xf32>
    %101 = math.tanh %100 : vector<8x32xf32>
    %102 = vector.extract_strided_slice %99 {offsets = [0, 0], sizes = [8, 32], strides = [1, 1]} : vector<8x96xf32> to vector<8x32xf32>
    %103 = vector.extract_strided_slice %99 {offsets = [0, 32], sizes = [8, 32], strides = [1, 1]} : vector<8x96xf32> to vector<8x32xf32>
    %104 = vector.extract_strided_slice %99 {offsets = [0, 64], sizes = [8, 32], strides = [1, 1]} : vector<8x96xf32> to vector<8x32xf32>
    %105 = arith.mulf %103, %85 : vector<8x32xf32>
    %106 = arith.mulf %102, %101 : vector<8x32xf32>
    %107 = arith.addf %105, %106 : vector<8x32xf32>
    %108 = math.tanh %107 : vector<8x32xf32>
    %109 = arith.mulf %104, %108 : vector<8x32xf32>
    %c4_i32 = arith.constant 4 : i32
    %110 = arith.index_cast %c4_i32 : i32 to index
    %c0_34 = arith.constant 0 : index
    %c0_35 = arith.constant 0 : index
    %111 = vector.load %arg10[%110, %c0_34, %c0_35] : memref<8x8x128xf32, #tpu.memory_space<vmem>>, vector<1x8x128xf32>
    %112 = vector.shape_cast %111 : vector<1x8x128xf32> to vector<8x128xf32>
    %113 = arith.truncf %109 : vector<8x32xf32> to vector<8x32xbf16>
    %cst_36 = arith.constant dense<0.000000e+00> : vector<8x128xf32>
    %114 = tpu.matmul %113, %19, %cst_36 {dimension_numbers = #tpu.dot_dimension_numbers<[1], [0], [0], [1], [0, 0, 1, 1], [], []>} : vector<8x32xbf16>, vector<32x128xbf16>, vector<8x128xf32> -> vector<8x128xf32>
    %115 = arith.addf %112, %114 : vector<8x128xf32>
    %116 = vector.extract_strided_slice %115 {offsets = [0, 0], sizes = [8, 96], strides = [1, 1]} : vector<8x128xf32> to vector<8x96xf32>
    %117 = arith.negf %116 : vector<8x96xf32>
    %118 = math.exp %117 : vector<8x96xf32>
    %cst_37 = arith.constant 1.000000e+00 : f32
    %119 = vector.broadcast %cst_37 : f32 to vector<8x96xf32>
    %120 = arith.addf %119, %118 : vector<8x96xf32>
    %121 = arith.divf %119, %120 : vector<8x96xf32>
    %122 = vector.extract_strided_slice %115 {offsets = [0, 96], sizes = [8, 32], strides = [1, 1]} : vector<8x128xf32> to vector<8x32xf32>
    %123 = math.tanh %122 : vector<8x32xf32>
    %124 = vector.extract_strided_slice %121 {offsets = [0, 0], sizes = [8, 32], strides = [1, 1]} : vector<8x96xf32> to vector<8x32xf32>
    %125 = vector.extract_strided_slice %121 {offsets = [0, 32], sizes = [8, 32], strides = [1, 1]} : vector<8x96xf32> to vector<8x32xf32>
    %126 = vector.extract_strided_slice %121 {offsets = [0, 64], sizes = [8, 32], strides = [1, 1]} : vector<8x96xf32> to vector<8x32xf32>
    %127 = arith.mulf %125, %107 : vector<8x32xf32>
    %128 = arith.mulf %124, %123 : vector<8x32xf32>
    %129 = arith.addf %127, %128 : vector<8x32xf32>
    %130 = math.tanh %129 : vector<8x32xf32>
    %131 = arith.mulf %126, %130 : vector<8x32xf32>
    %c5_i32 = arith.constant 5 : i32
    %132 = arith.index_cast %c5_i32 : i32 to index
    %c0_38 = arith.constant 0 : index
    %c0_39 = arith.constant 0 : index
    %133 = vector.load %arg10[%132, %c0_38, %c0_39] : memref<8x8x128xf32, #tpu.memory_space<vmem>>, vector<1x8x128xf32>
    %134 = vector.shape_cast %133 : vector<1x8x128xf32> to vector<8x128xf32>
    %135 = arith.truncf %131 : vector<8x32xf32> to vector<8x32xbf16>
    %cst_40 = arith.constant dense<0.000000e+00> : vector<8x128xf32>
    %136 = tpu.matmul %135, %19, %cst_40 {dimension_numbers = #tpu.dot_dimension_numbers<[1], [0], [0], [1], [0, 0, 1, 1], [], []>} : vector<8x32xbf16>, vector<32x128xbf16>, vector<8x128xf32> -> vector<8x128xf32>
    %137 = arith.addf %134, %136 : vector<8x128xf32>
    %138 = vector.extract_strided_slice %137 {offsets = [0, 0], sizes = [8, 96], strides = [1, 1]} : vector<8x128xf32> to vector<8x96xf32>
    %139 = arith.negf %138 : vector<8x96xf32>
    %140 = math.exp %139 : vector<8x96xf32>
    %cst_41 = arith.constant 1.000000e+00 : f32
    %141 = vector.broadcast %cst_41 : f32 to vector<8x96xf32>
    %142 = arith.addf %141, %140 : vector<8x96xf32>
    %143 = arith.divf %141, %142 : vector<8x96xf32>
    %144 = vector.extract_strided_slice %137 {offsets = [0, 96], sizes = [8, 32], strides = [1, 1]} : vector<8x128xf32> to vector<8x32xf32>
    %145 = math.tanh %144 : vector<8x32xf32>
    %146 = vector.extract_strided_slice %143 {offsets = [0, 0], sizes = [8, 32], strides = [1, 1]} : vector<8x96xf32> to vector<8x32xf32>
    %147 = vector.extract_strided_slice %143 {offsets = [0, 32], sizes = [8, 32], strides = [1, 1]} : vector<8x96xf32> to vector<8x32xf32>
    %148 = vector.extract_strided_slice %143 {offsets = [0, 64], sizes = [8, 32], strides = [1, 1]} : vector<8x96xf32> to vector<8x32xf32>
    %149 = arith.mulf %147, %129 : vector<8x32xf32>
    %150 = arith.mulf %146, %145 : vector<8x32xf32>
    %151 = arith.addf %149, %150 : vector<8x32xf32>
    %152 = math.tanh %151 : vector<8x32xf32>
    %153 = arith.mulf %148, %152 : vector<8x32xf32>
    %c6_i32 = arith.constant 6 : i32
    %154 = arith.index_cast %c6_i32 : i32 to index
    %c0_42 = arith.constant 0 : index
    %c0_43 = arith.constant 0 : index
    %155 = vector.load %arg10[%154, %c0_42, %c0_43] : memref<8x8x128xf32, #tpu.memory_space<vmem>>, vector<1x8x128xf32>
    %156 = vector.shape_cast %155 : vector<1x8x128xf32> to vector<8x128xf32>
    %157 = arith.truncf %153 : vector<8x32xf32> to vector<8x32xbf16>
    %cst_44 = arith.constant dense<0.000000e+00> : vector<8x128xf32>
    %158 = tpu.matmul %157, %19, %cst_44 {dimension_numbers = #tpu.dot_dimension_numbers<[1], [0], [0], [1], [0, 0, 1, 1], [], []>} : vector<8x32xbf16>, vector<32x128xbf16>, vector<8x128xf32> -> vector<8x128xf32>
    %159 = arith.addf %156, %158 : vector<8x128xf32>
    %160 = vector.extract_strided_slice %159 {offsets = [0, 0], sizes = [8, 96], strides = [1, 1]} : vector<8x128xf32> to vector<8x96xf32>
    %161 = arith.negf %160 : vector<8x96xf32>
    %162 = math.exp %161 : vector<8x96xf32>
    %cst_45 = arith.constant 1.000000e+00 : f32
    %163 = vector.broadcast %cst_45 : f32 to vector<8x96xf32>
    %164 = arith.addf %163, %162 : vector<8x96xf32>
    %165 = arith.divf %163, %164 : vector<8x96xf32>
    %166 = vector.extract_strided_slice %159 {offsets = [0, 96], sizes = [8, 32], strides = [1, 1]} : vector<8x128xf32> to vector<8x32xf32>
    %167 = math.tanh %166 : vector<8x32xf32>
    %168 = vector.extract_strided_slice %165 {offsets = [0, 0], sizes = [8, 32], strides = [1, 1]} : vector<8x96xf32> to vector<8x32xf32>
    %169 = vector.extract_strided_slice %165 {offsets = [0, 32], sizes = [8, 32], strides = [1, 1]} : vector<8x96xf32> to vector<8x32xf32>
    %170 = vector.extract_strided_slice %165 {offsets = [0, 64], sizes = [8, 32], strides = [1, 1]} : vector<8x96xf32> to vector<8x32xf32>
    %171 = arith.mulf %169, %151 : vector<8x32xf32>
    %172 = arith.mulf %168, %167 : vector<8x32xf32>
    %173 = arith.addf %171, %172 : vector<8x32xf32>
    %174 = math.tanh %173 : vector<8x32xf32>
    %175 = arith.mulf %170, %174 : vector<8x32xf32>
    %c7_i32 = arith.constant 7 : i32
    %176 = arith.index_cast %c7_i32 : i32 to index
    %c0_46 = arith.constant 0 : index
    %c0_47 = arith.constant 0 : index
    %177 = vector.load %arg10[%176, %c0_46, %c0_47] : memref<8x8x128xf32, #tpu.memory_space<vmem>>, vector<1x8x128xf32>
    %178 = vector.shape_cast %177 : vector<1x8x128xf32> to vector<8x128xf32>
    %179 = arith.truncf %175 : vector<8x32xf32> to vector<8x32xbf16>
    %cst_48 = arith.constant dense<0.000000e+00> : vector<8x128xf32>
    %180 = tpu.matmul %179, %19, %cst_48 {dimension_numbers = #tpu.dot_dimension_numbers<[1], [0], [0], [1], [0, 0, 1, 1], [], []>} : vector<8x32xbf16>, vector<32x128xbf16>, vector<8x128xf32> -> vector<8x128xf32>
    %181 = arith.addf %178, %180 : vector<8x128xf32>
    %182 = vector.extract_strided_slice %181 {offsets = [0, 0], sizes = [8, 96], strides = [1, 1]} : vector<8x128xf32> to vector<8x96xf32>
    %183 = arith.negf %182 : vector<8x96xf32>
    %184 = math.exp %183 : vector<8x96xf32>
    %cst_49 = arith.constant 1.000000e+00 : f32
    %185 = vector.broadcast %cst_49 : f32 to vector<8x96xf32>
    %186 = arith.addf %185, %184 : vector<8x96xf32>
    %187 = arith.divf %185, %186 : vector<8x96xf32>
    %188 = vector.extract_strided_slice %181 {offsets = [0, 96], sizes = [8, 32], strides = [1, 1]} : vector<8x128xf32> to vector<8x32xf32>
    %189 = math.tanh %188 : vector<8x32xf32>
    %190 = vector.extract_strided_slice %187 {offsets = [0, 0], sizes = [8, 32], strides = [1, 1]} : vector<8x96xf32> to vector<8x32xf32>
    %191 = vector.extract_strided_slice %187 {offsets = [0, 32], sizes = [8, 32], strides = [1, 1]} : vector<8x96xf32> to vector<8x32xf32>
    %192 = vector.extract_strided_slice %187 {offsets = [0, 64], sizes = [8, 32], strides = [1, 1]} : vector<8x96xf32> to vector<8x32xf32>
    %193 = arith.mulf %191, %173 : vector<8x32xf32>
    %194 = arith.mulf %190, %189 : vector<8x32xf32>
    %195 = arith.addf %193, %194 : vector<8x32xf32>
    %196 = math.tanh %195 : vector<8x32xf32>
    %197 = arith.mulf %192, %196 : vector<8x32xf32>
    %c8_i32 = arith.constant 8 : i32
    %c0_50 = arith.constant 0 : index
    %c0_51 = arith.constant 0 : index
    %198 = vector.load %arg7[%c0_50, %c0_51] : memref<1x32xf32, #tpu.memory_space<vmem>>, vector<1x32xf32>
    %199 = vector.broadcast %198 : vector<1x32xf32> to vector<8x32xf32>
    %200 = arith.mulf %197, %199 : vector<8x32xf32>
    %cst_52 = arith.constant dense<0.000000e+00> : vector<8xf32>
    %201 = vector.multi_reduction <add>, %200, %cst_52 [1] : vector<8x32xf32> to vector<8xf32>
    %c0_53 = arith.constant 0 : index
    %c0_54 = arith.constant 0 : index
    %202 = memref.load %arg8[%c0_53, %c0_54] : memref<1x1xf32, #tpu.memory_space<smem>>
    %203 = vector.broadcast %202 : f32 to vector<8xf32>
    %204 = arith.addf %201, %203 : vector<8xf32>
    %205 = vector.shape_cast %204 : vector<8xf32> to vector<1x1x8xf32>
    %c0_55 = arith.constant 0 : index
    %c0_56 = arith.constant 0 : index
    %c0_57 = arith.constant 0 : index
    %206 = vector.load %arg9[%c0_55, %c0_56, %c0_57] : memref<1x1x8xf32, #tpu.memory_space<vmem>>, vector<1x1x8xf32>
    tpu.vector_store %arg9[%c0_55, %c0_56, %c0_57], %205 {strides = array<i32>} : memref<1x1x8xf32, #tpu.memory_space<vmem>>, vector<1x1x8xf32>,
    return
  }
  func.func @transform_0(%arg0: i32) -> (i32, i32, i32) {
    %c0_i32 = arith.constant 0 : i32
    %c0_i32_0 = arith.constant 0 : i32
    %c0_i32_1 = arith.constant 0 : i32
    return %c0_i32, %arg0, %c0_i32_0 : i32, i32, i32
  }
  func.func @transform_1(%arg0: i32) -> (i32, i32) {
    %c0_i32 = arith.constant 0 : i32
    %c0_i32_0 = arith.constant 0 : i32
    %c0_i32_1 = arith.constant 0 : i32
    return %c0_i32, %c0_i32_0 : i32, i32
  }
  func.func @transform_2(%arg0: i32) -> (i32, i32) {
    %c0_i32 = arith.constant 0 : i32
    %c0_i32_0 = arith.constant 0 : i32
    %c0_i32_1 = arith.constant 0 : i32
    return %c0_i32, %c0_i32_0 : i32, i32
  }
  func.func @transform_3(%arg0: i32) -> (i32, i32) {
    %c0_i32 = arith.constant 0 : i32
    %c0_i32_0 = arith.constant 0 : i32
    %c0_i32_1 = arith.constant 0 : i32
    return %c0_i32, %c0_i32_0 : i32, i32
  }
  func.func @transform_4(%arg0: i32) -> (i32, i32) {
    %c0_i32 = arith.constant 0 : i32
    %c0_i32_0 = arith.constant 0 : i32
    %c0_i32_1 = arith.constant 0 : i32
    return %c0_i32, %c0_i32_0 : i32, i32
  }
  func.func @transform_5(%arg0: i32) -> (i32, i32) {
    %c0_i32 = arith.constant 0 : i32
    %c0_i32_0 = arith.constant 0 : i32
    %c0_i32_1 = arith.constant 0 : i32
    return %c0_i32, %c0_i32_0 : i32, i32
  }
  func.func @transform_6(%arg0: i32) -> (i32, i32) {
    %c0_i32 = arith.constant 0 : i32
    %c0_i32_0 = arith.constant 0 : i32
    %c0_i32_1 = arith.constant 0 : i32
    return %c0_i32, %c0_i32_0 : i32, i32
  }
  func.func @transform_7(%arg0: i32) -> (i32, i32) {
    %c0_i32 = arith.constant 0 : i32
    %c0_i32_0 = arith.constant 0 : i32
    %c0_i32_1 = arith.constant 0 : i32
    return %c0_i32, %c0_i32_0 : i32, i32
  }
  func.func @transform_8(%arg0: i32) -> (i32, i32, i32) {
    %c0_i32 = arith.constant 0 : i32
    %c0_i32_0 = arith.constant 0 : i32
    %c0_i32_1 = arith.constant 0 : i32
    return %arg0, %c0_i32, %c0_i32_0 : i32, i32, i32
  }
}

</mosaic_0001>

<llo_original>
// kernel: tpu_custom_call.1
$region0: #{tpu_custom_call.1}
  #allocation0 [shape = 'u32[]', space=smem, size = 0x4, offset = 0x4, fixed_abs, tag = 'smem constant byte address 0x4 - core index']
  #allocation1 [shape = 'u32[144,128]{1,0:T(1,128)}', space=vmem, size = 0x12000, scoped, tag = 'internal scratch']
  #allocation2 [shape = 'f32[8,8,128]{2,1,0:T(8,128)}', space=vmem, size = 0x8000, scoped, tag = 'scratch operand']
  #allocation3 [shape = 'f32[1,1]{1,0:T(1,128)S(6)}', space=smem, size = 0x200, scoped, tag = 'scoped memory for tpu_custom_call.1']
  %s0 = inlined_call_operand.vmem [shape: f32[8,8,1], index: 0, kind: input, shape index: {}]
  %s1 = inlined_call_operand.vmem [shape: f32[1,256], index: 1, kind: input, shape index: {}]
  %s2 = inlined_call_operand.vmem [shape: f32[1,256], index: 2, kind: input, shape index: {}]
  %s3 = inlined_call_operand.hbm [shape: bf16[256,128], index: 3, kind: input, shape index: {}]
  %s4 = inlined_call_operand.vmem [shape: f32[1,128], index: 4, kind: input, shape index: {}]
  %s5 = inlined_call_operand.vmem [shape: bf16[32,128], index: 5, kind: input, shape index: {}]
  %s6 = inlined_call_operand.vmem [shape: f32[1,32], index: 6, kind: input, shape index: {}]
  %s7 = inlined_call_operand.<no memory space> [shape: f32[1,1], index: 7, kind: input, shape index: {}]
  %s8 = inlined_call_operand.hbm [shape: f32[1,1,8], index: 8, kind: output, shape index: {}]
  %s9 = sld [smem:[#allocation0]]
  $region46: #{tpu_custom_call.1} parent=0
    _
  %s11 = ssub.s32 1, %s9
  %s12 = scalar_select 0, %s11, %s9
  %13 = sst [smem:[#allocation3]] %s7
  $region1: #{tpu_custom_call.1} parent=0
    #allocation4 [shape = 'u8[65536]{0}', space=vmem, size = 0x10000, scoped, tag = 'input window, operand 3, single buffered']
    #allocation5 [shape = 's32[1]{0}', space=sflag, size = 0x4, scoped, tag = 'scoped memory for tpu_custom_call.1']
    #allocation6 [shape = 's32[1]{0}', space=sflag, size = 0x4, scoped, tag = 'scoped memory for tpu_custom_call.1']
    #allocation7 [shape = 'u8[512]{0}', space=vmem, size = 0x400, scoped, tag = 'output window, operand 0, single buffered']
    %14 = vsyncpa [#allocation5], 0
    %15 = vsyncpa [#allocation6], 0
    // Predicated region
    $region2: #{tpu_custom_call.1} parent=1 // pred_check
      _
    $region3: #{tpu_custom_call.1} parent=1 // pred_check_branch
      %17 = sbr.rel (0) target = $region5
    $region4: #{tpu_custom_call.1} parent=1 // pred_region
      _
    $region5: #{tpu_custom_call.1} parent=1 // pred_fallthru
      _
    // Predicated region
    $region6: #{tpu_custom_call.1} parent=1 // pred_check
      _
    $region7: #{tpu_custom_call.1} parent=1 // pred_check_branch
      %19 = sbr.rel (0) target = $region9
    $region8: #{tpu_custom_call.1} parent=1 // pred_region
      _
    $region9: #{tpu_custom_call.1} parent=1 // pred_fallthru
      _
    // Predicated region
    $region10: #{tpu_custom_call.1} parent=1 // pred_check
      _
    $region11: #{tpu_custom_call.1} parent=1 // pred_check_branch
      %21 = sbr.rel (0) target = $region13
    $region12: #{tpu_custom_call.1} parent=1 // pred_region
      _
    $region13: #{tpu_custom_call.1} parent=1 // pred_fallthru
      _
    // Predicated region
    $region14: #{tpu_custom_call.1} parent=1 // pred_check
      _
    $region15: #{tpu_custom_call.1} parent=1 // pred_check_branch
      %23 = sbr.rel (0) target = $region17
    $region16: #{tpu_custom_call.1} parent=1 // pred_region
      %s25 = ssub.s32 2048, 2048
      %26 = vsyncadd [#allocation5], %s25
      %s27 = sshll.u32 [#allocation4], 4
      %s28 = int_to_ptr.vmem [resolvable:$true] %s27
      %33 = dma.hbm_to_vmem [thread:$0]  %s3, 2048, %s28, [#allocation5], 64, 64, 4
    $region17: #{tpu_custom_call.1} parent=1 // pred_fallthru
      _
    // Predicated region
    $region18: #{tpu_custom_call.1} parent=1 // pred_check
      _
    $region19: #{tpu_custom_call.1} parent=1 // pred_check_branch
      %35 = sbr.rel (0) target = $region21
    $region20: #{tpu_custom_call.1} parent=1 // pred_region
      _
    $region21: #{tpu_custom_call.1} parent=1 // pred_fallthru
      _
    // Predicated region
    $region22: #{tpu_custom_call.1} parent=1 // pred_check
      _
    $region23: #{tpu_custom_call.1} parent=1 // pred_check_branch
      %37 = sbr.rel (0) target = $region25
    $region24: #{tpu_custom_call.1} parent=1 // pred_region
      _
    $region25: #{tpu_custom_call.1} parent=1 // pred_fallthru
      _
    // Predicated region
    $region26: #{tpu_custom_call.1} parent=1 // pred_check
      _
    $region27: #{tpu_custom_call.1} parent=1 // pred_check_branch
      %39 = sbr.rel (0) target = $region29
    $region28: #{tpu_custom_call.1} parent=1 // pred_region
      _
    $region29: #{tpu_custom_call.1} parent=1 // pred_fallthru
      _
    // Predicated region
    $region30: #{tpu_custom_call.1} parent=1 // pred_check
      _
    $region31: #{tpu_custom_call.1} parent=1 // pred_check_branch
      %41 = sbr.rel (0) target = $region33
    $region32: #{tpu_custom_call.1} parent=1 // pred_region
      _
    $region33: #{tpu_custom_call.1} parent=1 // pred_fallthru
      _
    // Predicated region
    $region34: #{tpu_custom_call.1} parent=1 // pred_check
      _
    $region35: #{tpu_custom_call.1} parent=1 // pred_check_branch
      %43 = sbr.rel (0) target = $region37
    $region36: #{tpu_custom_call.1} parent=1 // pred_region
      %44 = dma.done [#allocation5], 2048
    $region37: #{tpu_custom_call.1} parent=1 // pred_fallthru
      _
    %v46 = vld [vmem:[%s0] sm:$0xff]
    %v47 = vld [vmem:[%s0 + $0x8] sm:$0xff]
    %v48 = vld [vmem:[%s0 + $0x10] sm:$0xff]
    %v49 = vld [vmem:[%s0 + $0x18] sm:$0xff]
    %v50 = vld [vmem:[%s0 + $0x20] sm:$0xff]
    %v51 = vld [vmem:[%s0 + $0x28] sm:$0xff]
    %v52 = vld [vmem:[%s0 + $0x30] sm:$0xff]
    %v53 = vld [vmem:[%s0 + $0x38] sm:$0xff]
    %v54 = vld [vmem:[%s1] sm:$0x3]
    %56 = vset.pattern.permute.xlu0 0
    %57 = vperm.xlu0 %56, %v46
    %v58 = vpop.permute.xlu0 %57
    %61 = vset.pattern.permute.xlu0 0
    %62 = vperm.xlu0 %61, %v47
    %v63 = vpop.permute.xlu0 %62
    %66 = vset.pattern.permute.xlu0 0
    %67 = vperm.xlu0 %66, %v48
    %v68 = vpop.permute.xlu0 %67
    %71 = vset.pattern.permute.xlu0 0
    %72 = vperm.xlu0 %71, %v49
    %v73 = vpop.permute.xlu0 %72
    %76 = vset.pattern.permute.xlu0 0
    %77 = vperm.xlu0 %76, %v50
    %v78 = vpop.permute.xlu0 %77
    %81 = vset.pattern.permute.xlu0 0
    %82 = vperm.xlu0 %81, %v51
    %v83 = vpop.permute.xlu0 %82
    %86 = vset.pattern.permute.xlu0 0
    %87 = vperm.xlu0 %86, %v52
    %v88 = vpop.permute.xlu0 %87
    %91 = vset.pattern.permute.xlu0 0
    %92 = vperm.xlu0 %91, %v53
    %v93 = vpop.permute.xlu0 %92
    %v96 = vlaneseq
    %v97 = vshrl.u32 %v96, 7
    %v98 = vsub.s32 0, %v97
    %v99 = vrot.slane %v54, %v98
    %v100 = vlaneseq
    %v101 = vshrl.u32 %v100, 7
    %v102 = vsub.s32 1, %v101
    %v103 = vrot.slane %v54, %v102
    %v106 = vmul.f32 %v58, %v99
    %v107 = vmul.f32 %v58, %v103
    %v108 = vmul.f32 %v63, %v99
    %v109 = vmul.f32 %v63, %v103
    %v110 = vmul.f32 %v68, %v99
    %v111 = vmul.f32 %v68, %v103
    %v112 = vmul.f32 %v73, %v99
    %v113 = vmul.f32 %v73, %v103
    %v114 = vmul.f32 %v78, %v99
    %v115 = vmul.f32 %v78, %v103
    %v116 = vmul.f32 %v83, %v99
    %v117 = vmul.f32 %v83, %v103
    %v118 = vmul.f32 %v88, %v99
    %v119 = vmul.f32 %v88, %v103
    %v120 = vmul.f32 %v93, %v99
    %v121 = vmul.f32 %v93, %v103
    %v122 = vld [vmem:[%s2] sm:$0x3]
    %v124 = vlaneseq
    %v125 = vshrl.u32 %v124, 7
    %v126 = vsub.s32 0, %v125
    %v127 = vrot.slane %v122, %v126
    %v128 = vlaneseq
    %v129 = vshrl.u32 %v128, 7
    %v130 = vsub.s32 1, %v129
    %v131 = vrot.slane %v122, %v130
    %v134 = vadd.f32 %v106, %v127
    %v135 = vadd.f32 %v107, %v131
    %v136 = vadd.f32 %v108, %v127
    %v137 = vadd.f32 %v109, %v131
    %v138 = vadd.f32 %v110, %v127
    %v139 = vadd.f32 %v111, %v131
    %v140 = vadd.f32 %v112, %v127
    %v141 = vadd.f32 %v113, %v131
    %v142 = vadd.f32 %v114, %v127
    %v143 = vadd.f32 %v115, %v131
    %v144 = vadd.f32 %v116, %v127
    %v145 = vadd.f32 %v117, %v131
    %v146 = vadd.f32 %v118, %v127
    %v147 = vadd.f32 %v119, %v131
    %v148 = vadd.f32 %v120, %v127
    %v149 = vadd.f32 %v121, %v131
    %v150 = vmax.f32 %v134, 0.0
    %v151 = vmax.f32 %v135, 0.0
    %v152 = vmax.f32 %v136, 0.0
    %v153 = vmax.f32 %v137, 0.0
    %v154 = vmax.f32 %v138, 0.0
    %v155 = vmax.f32 %v139, 0.0
    %v156 = vmax.f32 %v140, 0.0
    %v157 = vmax.f32 %v141, 0.0
    %v158 = vmax.f32 %v142, 0.0
    %v159 = vmax.f32 %v143, 0.0
    %v160 = vmax.f32 %v144, 0.0
    %v161 = vmax.f32 %v145, 0.0
    %v162 = vmax.f32 %v146, 0.0
    %v163 = vmax.f32 %v147, 0.0
    %v164 = vmax.f32 %v148, 0.0
    %v165 = vmax.f32 %v149, 0.0
    %v166 = vpack.c.bf16 %v152, %v150
    %v167 = vpack.c.bf16 %v153, %v151
    %v168 = vpack.c.bf16 %v156, %v154
    %v169 = vpack.c.bf16 %v157, %v155
    %v170 = vpack.c.bf16 %v160, %v158
    %v171 = vpack.c.bf16 %v161, %v159
    %v172 = vpack.c.bf16 %v164, %v162
    %v173 = vpack.c.bf16 %v165, %v163
    %v174 = vld [vmem:[#allocation4] sm:$0xf]
    %v175 = vld [vmem:[#allocation4 + $0x4] sm:$0xf]
    %v176 = vld [vmem:[#allocation4 + $0x8] sm:$0xf]
    %v177 = vld [vmem:[#allocation4 + $0xc] sm:$0xf]
    %v178 = vld [vmem:[#allocation4 + $0x10] sm:$0xf]
    %v179 = vld [vmem:[#allocation4 + $0x14] sm:$0xf]
    %v180 = vld [vmem:[#allocation4 + $0x18] sm:$0xf]
    %v181 = vld [vmem:[#allocation4 + $0x1c] sm:$0xf]
    %v182 = vld [vmem:[#allocation4 + $0x20] sm:$0xf]
    %v183 = vld [vmem:[#allocation4 + $0x24] sm:$0xf]
    %v184 = vld [vmem:[#allocation4 + $0x28] sm:$0xf]
    %v185 = vld [vmem:[#allocation4 + $0x2c] sm:$0xf]
    %v186 = vld [vmem:[#allocation4 + $0x30] sm:$0xf]
    %v187 = vld [vmem:[#allocation4 + $0x34] sm:$0xf]
    %v188 = vld [vmem:[#allocation4 + $0x38] sm:$0xf]
    %v189 = vld [vmem:[#allocation4 + $0x3c] sm:$0xf]
    %v190 = vld [vmem:[#allocation4 + $0x40] sm:$0xf]
    %v191 = vld [vmem:[#allocation4 + $0x44] sm:$0xf]
    %v192 = vld [vmem:[#allocation4 + $0x48] sm:$0xf]
    %v193 = vld [vmem:[#allocation4 + $0x4c] sm:$0xf]
    %v194 = vld [vmem:[#allocation4 + $0x50] sm:$0xf]
    %v195 = vld [vmem:[#allocation4 + $0x54] sm:$0xf]
    %v196 = vld [vmem:[#allocation4 + $0x58] sm:$0xf]
    %v197 = vld [vmem:[#allocation4 + $0x5c] sm:$0xf]
    %v198 = vld [vmem:[#allocation4 + $0x60] sm:$0xf]
    %v199 = vld [vmem:[#allocation4 + $0x64] sm:$0xf]
    %v200 = vld [vmem:[#allocation4 + $0x68] sm:$0xf]
    %v201 = vld [vmem:[#allocation4 + $0x6c] sm:$0xf]
    %v202 = vld [vmem:[#allocation4 + $0x70] sm:$0xf]
    %v203 = vld [vmem:[#allocation4 + $0x74] sm:$0xf]
    %v204 = vld [vmem:[#allocation4 + $0x78] sm:$0xf]
    %v205 = vld [vmem:[#allocation4 + $0x7c] sm:$0xf]
    %v206 = vld [vmem:[%s4] sm:$0x1]
    %v208 = vlaneseq
    %v209 = vshrl.u32 %v208, 7
    %v210 = vsub.s32 0, %v209
    %v211 = vrot.slane %v206, %v210
    %v245 = vunpack.c.l.b16 %v174
    %v246 = vunpack.c.l.b16 %v175
    %v247 = vunpack.c.l.b16 %v176
    %v248 = vunpack.c.l.b16 %v177
    %v249 = vunpack.c.l.b16 %v178
    %v250 = vunpack.c.l.b16 %v179
    %v251 = vunpack.c.l.b16 %v180
    %v252 = vunpack.c.l.b16 %v181
    %v253 = vunpack.c.l.b16 %v182
    %v254 = vunpack.c.l.b16 %v183
    %v255 = vunpack.c.l.b16 %v184
    %v256 = vunpack.c.l.b16 %v185
    %v257 = vunpack.c.l.b16 %v186
    %v258 = vunpack.c.l.b16 %v187
    %v259 = vunpack.c.l.b16 %v188
    %v260 = vunpack.c.l.b16 %v189
    %v261 = vunpack.c.l.b16 %v190
    %v262 = vunpack.c.l.b16 %v191
    %v263 = vunpack.c.l.b16 %v192
    %v264 = vunpack.c.l.b16 %v193
    %v265 = vunpack.c.l.b16 %v194
    %v266 = vunpack.c.l.b16 %v195
    %v267 = vunpack.c.l.b16 %v196
    %v268 = vunpack.c.l.b16 %v197
    %v269 = vunpack.c.l.b16 %v198
    %v270 = vunpack.c.l.b16 %v199
    %v271 = vunpack.c.l.b16 %v200
    %v272 = vunpack.c.l.b16 %v201
    %v273 = vunpack.c.l.b16 %v202
    %v274 = vunpack.c.l.b16 %v203
    %v275 = vunpack.c.l.b16 %v204
    %v276 = vunpack.c.l.b16 %v205
    %v277 = vpack.c.b16 %v246, %v245
    %v278 = vpack.c.b16 %v248, %v247
    %v279 = vpack.c.b16 %v250, %v249
    %v280 = vpack.c.b16 %v252, %v251
    %v281 = vpack.c.b16 %v254, %v253
    %v282 = vpack.c.b16 %v256, %v255
    %v283 = vpack.c.b16 %v258, %v257
    %v284 = vpack.c.b16 %v260, %v259
    %v285 = vpack.c.b16 %v262, %v261
    %v286 = vpack.c.b16 %v264, %v263
    %v287 = vpack.c.b16 %v266, %v265
    %v288 = vpack.c.b16 %v268, %v267
    %v289 = vpack.c.b16 %v270, %v269
    %v290 = vpack.c.b16 %v272, %v271
    %v291 = vpack.c.b16 %v274, %v273
    %v292 = vpack.c.b16 %v276, %v275
    %309 = vmatprep.subr.bf16.mxu0 0
    %310 = vmatpush1.bf16.msra.mxu0 %v277
    %311 = vmatprep.subr.bf16.mxu0 0
    %312 = vmatpush1.bf16.msra.mxu0 %v278
    %313 = vmatprep.subr.bf16.mxu0 0
    %314 = vmatpush1.bf16.msra.mxu0 %v279
    %315 = vmatprep.subr.bf16.mxu0 0
    %316 = vmatpush1.bf16.msra.mxu0 %v280
    %317 = vmatprep.subr.bf16.mxu0 0
    %318 = vmatpush1.bf16.msra.mxu0 %v281
    %319 = vmatprep.subr.bf16.mxu0 0
    %320 = vmatpush1.bf16.msra.mxu0 %v282
    %321 = vmatprep.subr.bf16.mxu0 0
    %322 = vmatpush1.bf16.msra.mxu0 %v283
    %323 = vmatprep.subr.bf16.mxu0 0
    %324 = vmatpush1.bf16.msra.mxu0 %v284
    %325 = vmatprep.subr.bf16.mxu0 0
    %326 = vmatpush1.bf16.msra.mxu0 %v285
    %327 = vmatprep.subr.bf16.mxu0 0
    %328 = vmatpush1.bf16.msra.mxu0 %v286
    %329 = vmatprep.subr.bf16.mxu0 0
    %330 = vmatpush1.bf16.msra.mxu0 %v287
    %331 = vmatprep.subr.bf16.mxu0 0
    %332 = vmatpush1.bf16.msra.mxu0 %v288
    %333 = vmatprep.subr.bf16.mxu0 0
    %334 = vmatpush1.bf16.msra.mxu0 %v289
    %335 = vmatprep.subr.bf16.mxu0 0
    %336 = vmatpush1.bf16.msra.mxu0 %v290
    %337 = vmatprep.subr.bf16.mxu0 0
    %338 = vmatpush1.bf16.msra.mxu0 %v291
    %339 = vmatprep.subr.bf16.mxu0 0
    %340 = vmatpush1.bf16.msra.mxu0 %v292
    %341 = vmatprep.mubr.bf16.mxu0 %v167
    %342 = vmatmul.mubr.bf16.gmra.mrb[0].mxu0 %v166
    %v343 = vpop.f32.mrb[0].mxu0
    %v344 = vadd.f32 %v211, %v343
    %v345 = vpop.f32.mrb[0].mxu0
    %v346 = vpop.f32.mrb[0].mxu0
    %v347 = vadd.f32 %v211, %v346
    %v348 = vpop.f32.mrb[0].mxu0
    %349 = vmatprep.mubr.bf16.mxu0 %v169
    %350 = vmatmul.mubr.bf16.gmra.mrb[0].mxu0 %v168
    %v351 = vpop.f32.mrb[0].mxu0
    %v352 = vadd.f32 %v211, %v351
    %v353 = vpop.f32.mrb[0].mxu0
    %v354 = vpop.f32.mrb[0].mxu0
    %v355 = vadd.f32 %v211, %v354
    %v356 = vpop.f32.mrb[0].mxu0
    %357 = vmatprep.mubr.bf16.mxu0 %v171
    %358 = vmatmul.mubr.bf16.gmra.mrb[0].mxu0 %v170
    %v359 = vpop.f32.mrb[0].mxu0
    %v360 = vadd.f32 %v211, %v359
    %v361 = vpop.f32.mrb[0].mxu0
    %v362 = vpop.f32.mrb[0].mxu0
    %v363 = vadd.f32 %v211, %v362
    %v364 = vpop.f32.mrb[0].mxu0
    %365 = vmatprep.mubr.bf16.mxu0 %v173
    %366 = vmatmul.mubr.bf16.gmra.mrb[0].mxu0 %v172
    %v367 = vpop.f32.mrb[0].mxu0
    %v368 = vadd.f32 %v211, %v367
    %v369 = vpop.f32.mrb[0].mxu0
    %v370 = vpop.f32.mrb[0].mxu0
    %v371 = vadd.f32 %v211, %v370
    %v372 = vpop.f32.mrb[0].mxu0
    %373 = vdwg.mxu0
    %374 = vst [vmem:[#allocation2] sm:$0xff] %v344
    %375 = vst [vmem:[#allocation2 + $0x8] sm:$0xff] %v347
    %376 = vst [vmem:[#allocation2 + $0x10] sm:$0xff] %v352
    %377 = vst [vmem:[#allocation2 + $0x18] sm:$0xff] %v355
    %378 = vst [vmem:[#allocation2 + $0x20] sm:$0xff] %v360
    %379 = vst [vmem:[#allocation2 + $0x28] sm:$0xff] %v363
    %380 = vst [vmem:[#allocation2 + $0x30] sm:$0xff] %v368
    %381 = vst [vmem:[#allocation2 + $0x38] sm:$0xff] %v371
    %v382 = vld [vmem:[%s5] sm:$0xf]
    %v383 = vld [vmem:[%s5 + $0x4] sm:$0xf]
    %v384 = vld [vmem:[%s5 + $0x8] sm:$0xf]
    %v385 = vld [vmem:[%s5 + $0xc] sm:$0xf]
    %v386 = vld [vmem:[#allocation2] sm:$0xff]
    %v391 = vunpack.c.l.b16 %v382
    %v392 = vunpack.c.l.b16 %v383
    %v393 = vunpack.c.l.b16 %v384
    %v394 = vunpack.c.l.b16 %v385
    %v395 = vpack.c.b16 %v392, %v391
    %v396 = vpack.c.b16 %v394, %v393
    %vm399 = vcmask 261120
    %v401 = vsel %vm399, 0, 0
    %403 = vmatprep.subr.bf16.mxu0 0
    %404 = vmatpush1.bf16.msra.mxu0 %v395
    %405 = vmatprep.subr.bf16.mxu0 0
    %406 = vmatpush1.bf16.msra.mxu0 %v396
    %407 = vmatprep.subr.bf16.mxu0 0
    %408 = vmatpush1.bf16.msra.mxu0 0
    %409 = vmatprep.subr.bf16.mxu0 0
    %410 = vmatpush1.bf16.msra.mxu0 0
    %411 = vmatprep.subr.bf16.mxu0 0
    %412 = vmatpush1.bf16.msra.mxu0 0
    %413 = vmatprep.subr.bf16.mxu0 0
    %414 = vmatpush1.bf16.msra.mxu0 0
    %415 = vmatprep.subr.bf16.mxu0 0
    %416 = vmatpush1.bf16.msra.mxu0 0
    %417 = vmatprep.subr.bf16.mxu0 0
    %418 = vmatpush1.bf16.msra.mxu0 0
    %419 = vmatprep.subr.bf16.mxu0 0
    %420 = vmatpush1.bf16.msra.mxu0 0
    %421 = vmatprep.subr.bf16.mxu0 0
    %422 = vmatpush1.bf16.msra.mxu0 0
    %423 = vmatprep.subr.bf16.mxu0 0
    %424 = vmatpush1.bf16.msra.mxu0 0
    %425 = vmatprep.subr.bf16.mxu0 0
    %426 = vmatpush1.bf16.msra.mxu0 0
    %427 = vmatprep.subr.bf16.mxu0 0
    %428 = vmatpush1.bf16.msra.mxu0 0
    %429 = vmatprep.subr.bf16.mxu0 0
    %430 = vmatpush1.bf16.msra.mxu0 0
    %431 = vmatprep.subr.bf16.mxu0 0
    %432 = vmatpush1.bf16.msra.mxu0 0
    %433 = vmatprep.subr.bf16.mxu0 0
    %434 = vmatpush1.bf16.msra.mxu0 0
    %435 = vmatprep.mubr.bf16.mxu0 0
    %436 = vmatmul.mubr.bf16.gmra.mrb[0].mxu0 %v401
    %v437 = vpop.f32.mrb[0].mxu0
    %v438 = vadd.f32 0.0, %v437
    %v439 = vpop.f32.mrb[0].mxu0
    %v440 = vpop.f32.mrb[0].mxu0
    %v441 = vpop.f32.mrb[0].mxu0
    %442 = vdwg.mxu0
    %v443 = vadd.f32 %v386, %v438
    %v444 = vxor.u32 %v443, 2147483648
    %v445 = vmul.f32 %v444, 1.442695
    %v446 = vpow.pop %v445
    %v447 = vadd.f32 %v446, 1.0
    %v448 = vrcp.pop %v447
    %v449 = vmul.f32 1.0, %v448
    %v450 = vtanh.pop %v443
    %v451 = vmul.f32 %v449, 0.0
    %453 = vrot.lane.b32.xlu0 %v450, 32
    %v454 = vpop.permute.xlu0 %453
    %v456 = vmul.f32 %v449, %v454
    %458 = vrot.lane.b32.xlu0 %v456, 32
    %v459 = vpop.permute.xlu0 %458
    %v461 = vadd.f32 %v451, %v459
    %v462 = vtanh.pop %v461
    %464 = vrot.lane.b32.xlu0 %v462, 32
    %v465 = vpop.permute.xlu0 %464
    %v467 = vmul.f32 %v449, %v465
    %s468 = scalar_lea.vmem [#allocation2], 8
    %v469 = vld [vmem:[%s468] sm:$0xff]
    %v470 = vpack.c.bf16 %v467, %v467
    %472 = vrot.lane.b32.xlu0 %v470, 64
    %v473 = vpop.permute.xlu0 %472
    %v475 = vsel %vm399, %v473, 0
    %477 = vmatprep.subr.bf16.mxu0 0
    %478 = vmatpush1.bf16.msra.mxu0 %v395
    %479 = vmatprep.subr.bf16.mxu0 0
    %480 = vmatpush1.bf16.msra.mxu0 %v396
    %481 = vmatprep.subr.bf16.mxu0 0
    %482 = vmatpush1.bf16.msra.mxu0 0
    %483 = vmatprep.subr.bf16.mxu0 0
    %484 = vmatpush1.bf16.msra.mxu0 0
    %485 = vmatprep.subr.bf16.mxu0 0
    %486 = vmatpush1.bf16.msra.mxu0 0
    %487 = vmatprep.subr.bf16.mxu0 0
    %488 = vmatpush1.bf16.msra.mxu0 0
    %489 = vmatprep.subr.bf16.mxu0 0
    %490 = vmatpush1.bf16.msra.mxu0 0
    %491 = vmatprep.subr.bf16.mxu0 0
    %492 = vmatpush1.bf16.msra.mxu0 0
    %493 = vmatprep.subr.bf16.mxu0 0
    %494 = vmatpush1.bf16.msra.mxu0 0
    %495 = vmatprep.subr.bf16.mxu0 0
    %496 = vmatpush1.bf16.msra.mxu0 0
    %497 = vmatprep.subr.bf16.mxu0 0
    %498 = vmatpush1.bf16.msra.mxu0 0
    %499 = vmatprep.subr.bf16.mxu0 0
    %500 = vmatpush1.bf16.msra.mxu0 0
    %501 = vmatprep.subr.bf16.mxu0 0
    %502 = vmatpush1.bf16.msra.mxu0 0
    %503 = vmatprep.subr.bf16.mxu0 0
    %504 = vmatpush1.bf16.msra.mxu0 0
    %505 = vmatprep.subr.bf16.mxu0 0
    %506 = vmatpush1.bf16.msra.mxu0 0
    %507 = vmatprep.subr.bf16.mxu0 0
    %508 = vmatpush1.bf16.msra.mxu0 0
    %509 = vmatprep.mubr.bf16.mxu0 0
    %510 = vmatmul.mubr.bf16.gmra.mrb[0].mxu0 %v475
    %v511 = vpop.f32.mrb[0].mxu0
    %v512 = vadd.f32 0.0, %v511
    %v513 = vpop.f32.mrb[0].mxu0
    %v514 = vpop.f32.mrb[0].mxu0
    %v515 = vpop.f32.mrb[0].mxu0
    %516 = vdwg.mxu0
    %v517 = vadd.f32 %v469, %v512
    %v518 = vxor.u32 %v517, 2147483648
    %v519 = vmul.f32 %v518, 1.442695
    %v520 = vpow.pop %v519
    %v521 = vadd.f32 %v520, 1.0
    %v522 = vrcp.pop %v521
    %v523 = vmul.f32 1.0, %v522
    %v524 = vtanh.pop %v517
    %v525 = vmul.f32 %v523, %v461
    %527 = vrot.lane.b32.xlu0 %v524, 32
    %v528 = vpop.permute.xlu0 %527
    %v530 = vmul.f32 %v523, %v528
    %532 = vrot.lane.b32.xlu0 %v530, 32
    %v533 = vpop.permute.xlu0 %532
    %v535 = vadd.f32 %v525, %v533
    %v536 = vtanh.pop %v535
    %538 = vrot.lane.b32.xlu0 %v536, 32
    %v539 = vpop.permute.xlu0 %538
    %v541 = vmul.f32 %v523, %v539
    %s542 = scalar_lea.vmem [#allocation2], 16
    %v543 = vld [vmem:[%s542] sm:$0xff]
    %v544 = vpack.c.bf16 %v541, %v541
    %546 = vrot.lane.b32.xlu0 %v544, 64
    %v547 = vpop.permute.xlu0 %546
    %v549 = vsel %vm399, %v547, 0
    %551 = vmatprep.subr.bf16.mxu0 0
    %552 = vmatpush1.bf16.msra.mxu0 %v395
    %553 = vmatprep.subr.bf16.mxu0 0
    %554 = vmatpush1.bf16.msra.mxu0 %v396
    %555 = vmatprep.subr.bf16.mxu0 0
    %556 = vmatpush1.bf16.msra.mxu0 0
    %557 = vmatprep.subr.bf16.mxu0 0
    %558 = vmatpush1.bf16.msra.mxu0 0
    %559 = vmatprep.subr.bf16.mxu0 0
    %560 = vmatpush1.bf16.msra.mxu0 0
    %561 = vmatprep.subr.bf16.mxu0 0
    %562 = vmatpush1.bf16.msra.mxu0 0
    %563 = vmatprep.subr.bf16.mxu0 0
    %564 = vmatpush1.bf16.msra.mxu0 0
    %565 = vmatprep.subr.bf16.mxu0 0
    %566 = vmatpush1.bf16.msra.mxu0 0
    %567 = vmatprep.subr.bf16.mxu0 0
    %568 = vmatpush1.bf16.msra.mxu0 0
    %569 = vmatprep.subr.bf16.mxu0 0
    %570 = vmatpush1.bf16.msra.mxu0 0
    %571 = vmatprep.subr.bf16.mxu0 0
    %572 = vmatpush1.bf16.msra.mxu0 0
    %573 = vmatprep.subr.bf16.mxu0 0
    %574 = vmatpush1.bf16.msra.mxu0 0
    %575 = vmatprep.subr.bf16.mxu0 0
    %576 = vmatpush1.bf16.msra.mxu0 0
    %577 = vmatprep.subr.bf16.mxu0 0
    %578 = vmatpush1.bf16.msra.mxu0 0
    %579 = vmatprep.subr.bf16.mxu0 0
    %580 = vmatpush1.bf16.msra.mxu0 0
    %581 = vmatprep.subr.bf16.mxu0 0
    %582 = vmatpush1.bf16.msra.mxu0 0
    %583 = vmatprep.mubr.bf16.mxu0 0
    %584 = vmatmul.mubr.bf16.gmra.mrb[0].mxu0 %v549
    %v585 = vpop.f32.mrb[0].mxu0
    %v586 = vadd.f32 0.0, %v585
    %v587 = vpop.f32.mrb[0].mxu0
    %v588 = vpop.f32.mrb[0].mxu0
    %v589 = vpop.f32.mrb[0].mxu0
    %590 = vdwg.mxu0
    %v591 = vadd.f32 %v543, %v586
    %v592 = vxor.u32 %v591, 2147483648
    %v593 = vmul.f32 %v592, 1.442695
    %v594 = vpow.pop %v593
    %v595 = vadd.f32 %v594, 1.0
    %v596 = vrcp.pop %v595
    %v597 = vmul.f32 1.0, %v596
    %v598 = vtanh.pop %v591
    %v599 = vmul.f32 %v597, %v535
    %601 = vrot.lane.b32.xlu0 %v598, 32
    %v602 = vpop.permute.xlu0 %601
    %v604 = vmul.f32 %v597, %v602
    %606 = vrot.lane.b32.xlu0 %v604, 32
    %v607 = vpop.permute.xlu0 %606
    %v609 = vadd.f32 %v599, %v607
    %v610 = vtanh.pop %v609
    %612 = vrot.lane.b32.xlu0 %v610, 32
    %v613 = vpop.permute.xlu0 %612
    %v615 = vmul.f32 %v597, %v613
    %s616 = scalar_lea.vmem [#allocation2], 24
    %v617 = vld [vmem:[%s616] sm:$0xff]
    %v618 = vpack.c.bf16 %v615, %v615
    %620 = vrot.lane.b32.xlu0 %v618, 64
    %v621 = vpop.permute.xlu0 %620
    %v623 = vsel %vm399, %v621, 0
    %625 = vmatprep.subr.bf16.mxu0 0
    %626 = vmatpush1.bf16.msra.mxu0 %v395
    %627 = vmatprep.subr.bf16.mxu0 0
    %628 = vmatpush1.bf16.msra.mxu0 %v396
    %629 = vmatprep.subr.bf16.mxu0 0
    %630 = vmatpush1.bf16.msra.mxu0 0
    %631 = vmatprep.subr.bf16.mxu0 0
    %632 = vmatpush1.bf16.msra.mxu0 0
    %633 = vmatprep.subr.bf16.mxu0 0
    %634 = vmatpush1.bf16.msra.mxu0 0
    %635 = vmatprep.subr.bf16.mxu0 0
    %636 = vmatpush1.bf16.msra.mxu0 0
    %637 = vmatprep.subr.bf16.mxu0 0
    %638 = vmatpush1.bf16.msra.mxu0 0
    %639 = vmatprep.subr.bf16.mxu0 0
    %640 = vmatpush1.bf16.msra.mxu0 0
    %641 = vmatprep.subr.bf16.mxu0 0
    %642 = vmatpush1.bf16.msra.mxu0 0
    %643 = vmatprep.subr.bf16.mxu0 0
    %644 = vmatpush1.bf16.msra.mxu0 0
    %645 = vmatprep.subr.bf16.mxu0 0
    %646 = vmatpush1.bf16.msra.mxu0 0
    %647 = vmatprep.subr.bf16.mxu0 0
    %648 = vmatpush1.bf16.msra.mxu0 0
    %649 = vmatprep.subr.bf16.mxu0 0
    %650 = vmatpush1.bf16.msra.mxu0 0
    %651 = vmatprep.subr.bf16.mxu0 0
    %652 = vmatpush1.bf16.msra.mxu0 0
    %653 = vmatprep.subr.bf16.mxu0 0
    %654 = vmatpush1.bf16.msra.mxu0 0
    %655 = vmatprep.subr.bf16.mxu0 0
    %656 = vmatpush1.bf16.msra.mxu0 0
    %657 = vmatprep.mubr.bf16.mxu0 0
    %658 = vmatmul.mubr.bf16.gmra.mrb[0].mxu0 %v623
    %v659 = vpop.f32.mrb[0].mxu0
    %v660 = vadd.f32 0.0, %v659
    %v661 = vpop.f32.mrb[0].mxu0
    %v662 = vpop.f32.mrb[0].mxu0
    %v663 = vpop.f32.mrb[0].mxu0
    %664 = vdwg.mxu0
    %v665 = vadd.f32 %v617, %v660
    %v666 = vxor.u32 %v665, 2147483648
    %v667 = vmul.f32 %v666, 1.442695
    %v668 = vpow.pop %v667
    %v669 = vadd.f32 %v668, 1.0
    %v670 = vrcp.pop %v669
    %v671 = vmul.f32 1.0, %v670
    %v672 = vtanh.pop %v665
    %v673 = vmul.f32 %v671, %v609
    %675 = vrot.lane.b32.xlu0 %v672, 32
    %v676 = vpop.permute.xlu0 %675
    %v678 = vmul.f32 %v671, %v676
    %680 = vrot.lane.b32.xlu0 %v678, 32
    %v681 = vpop.permute.xlu0 %680
    %v683 = vadd.f32 %v673, %v681
    %v684 = vtanh.pop %v683
    %686 = vrot.lane.b32.xlu0 %v684, 32
    %v687 = vpop.permute.xlu0 %686
    %v689 = vmul.f32 %v671, %v687
    %s690 = scalar_lea.vmem [#allocation2], 32
    %v691 = vld [vmem:[%s690] sm:$0xff]
    %v692 = vpack.c.bf16 %v689, %v689
    %694 = vrot.lane.b32.xlu0 %v692, 64
    %v695 = vpop.permute.xlu0 %694
    %v697 = vsel %vm399, %v695, 0
    %699 = vmatprep.subr.bf16.mxu0 0
    %700 = vmatpush1.bf16.msra.mxu0 %v395
    %701 = vmatprep.subr.bf16.mxu0 0
    %702 = vmatpush1.bf16.msra.mxu0 %v396
    %703 = vmatprep.subr.bf16.mxu0 0
    %704 = vmatpush1.bf16.msra.mxu0 0
    %705 = vmatprep.subr.bf16.mxu0 0
    %706 = vmatpush1.bf16.msra.mxu0 0
    %707 = vmatprep.subr.bf16.mxu0 0
    %708 = vmatpush1.bf16.msra.mxu0 0
    %709 = vmatprep.subr.bf16.mxu0 0
    %710 = vmatpush1.bf16.msra.mxu0 0
    %711 = vmatprep.subr.bf16.mxu0 0
    %712 = vmatpush1.bf16.msra.mxu0 0
    %713 = vmatprep.subr.bf16.mxu0 0
    %714 = vmatpush1.bf16.msra.mxu0 0
    %715 = vmatprep.subr.bf16.mxu0 0
    %716 = vmatpush1.bf16.msra.mxu0 0
    %717 = vmatprep.subr.bf16.mxu0 0
    %718 = vmatpush1.bf16.msra.mxu0 0
    %719 = vmatprep.subr.bf16.mxu0 0
    %720 = vmatpush1.bf16.msra.mxu0 0
    %721 = vmatprep.subr.bf16.mxu0 0
    %722 = vmatpush1.bf16.msra.mxu0 0
    %723 = vmatprep.subr.bf16.mxu0 0
    %724 = vmatpush1.bf16.msra.mxu0 0
    %725 = vmatprep.subr.bf16.mxu0 0
    %726 = vmatpush1.bf16.msra.mxu0 0
    %727 = vmatprep.subr.bf16.mxu0 0
    %728 = vmatpush1.bf16.msra.mxu0 0
    %729 = vmatprep.subr.bf16.mxu0 0
    %730 = vmatpush1.bf16.msra.mxu0 0
    %731 = vmatprep.mubr.bf16.mxu0 0
    %732 = vmatmul.mubr.bf16.gmra.mrb[0].mxu0 %v697
    %v733 = vpop.f32.mrb[0].mxu0
    %v734 = vadd.f32 0.0, %v733
    %v735 = vpop.f32.mrb[0].mxu0
    %v736 = vpop.f32.mrb[0].mxu0
    %v737 = vpop.f32.mrb[0].mxu0
    %738 = vdwg.mxu0
    %v739 = vadd.f32 %v691, %v734
    %v740 = vxor.u32 %v739, 2147483648
    %v741 = vmul.f32 %v740, 1.442695
    %v742 = vpow.pop %v741
    %v743 = vadd.f32 %v742, 1.0
    %v744 = vrcp.pop %v743
    %v745 = vmul.f32 1.0, %v744
    %v746 = vtanh.pop %v739
    %v747 = vmul.f32 %v745, %v683
    %749 = vrot.lane.b32.xlu0 %v746, 32
    %v750 = vpop.permute.xlu0 %749
    %v752 = vmul.f32 %v745, %v750
    %754 = vrot.lane.b32.xlu0 %v752, 32
    %v755 = vpop.permute.xlu0 %754
    %v757 = vadd.f32 %v747, %v755
    %v758 = vtanh.pop %v757
    %760 = vrot.lane.b32.xlu0 %v758, 32
    %v761 = vpop.permute.xlu0 %760
    %v763 = vmul.f32 %v745, %v761
    %s764 = scalar_lea.vmem [#allocation2], 40
    %v765 = vld [vmem:[%s764] sm:$0xff]
    %v766 = vpack.c.bf16 %v763, %v763
    %768 = vrot.lane.b32.xlu0 %v766, 64
    %v769 = vpop.permute.xlu0 %768
    %v771 = vsel %vm399, %v769, 0
    %773 = vmatprep.subr.bf16.mxu0 0
    %774 = vmatpush1.bf16.msra.mxu0 %v395
    %775 = vmatprep.subr.bf16.mxu0 0
    %776 = vmatpush1.bf16.msra.mxu0 %v396
    %777 = vmatprep.subr.bf16.mxu0 0
    %778 = vmatpush1.bf16.msra.mxu0 0
    %779 = vmatprep.subr.bf16.mxu0 0
    %780 = vmatpush1.bf16.msra.mxu0 0
    %781 = vmatprep.subr.bf16.mxu0 0
    %782 = vmatpush1.bf16.msra.mxu0 0
    %783 = vmatprep.subr.bf16.mxu0 0
    %784 = vmatpush1.bf16.msra.mxu0 0
    %785 = vmatprep.subr.bf16.mxu0 0
    %786 = vmatpush1.bf16.msra.mxu0 0
    %787 = vmatprep.subr.bf16.mxu0 0
    %788 = vmatpush1.bf16.msra.mxu0 0
    %789 = vmatprep.subr.bf16.mxu0 0
    %790 = vmatpush1.bf16.msra.mxu0 0
    %791 = vmatprep.subr.bf16.mxu0 0
    %792 = vmatpush1.bf16.msra.mxu0 0
    %793 = vmatprep.subr.bf16.mxu0 0
    %794 = vmatpush1.bf16.msra.mxu0 0
    %795 = vmatprep.subr.bf16.mxu0 0
    %796 = vmatpush1.bf16.msra.mxu0 0
    %797 = vmatprep.subr.bf16.mxu0 0
    %798 = vmatpush1.bf16.msra.mxu0 0
    %799 = vmatprep.subr.bf16.mxu0 0
    %800 = vmatpush1.bf16.msra.mxu0 0
    %801 = vmatprep.subr.bf16.mxu0 0
    %802 = vmatpush1.bf16.msra.mxu0 0
    %803 = vmatprep.subr.bf16.mxu0 0
    %804 = vmatpush1.bf16.msra.mxu0 0
    %805 = vmatprep.mubr.bf16.mxu0 0
    %806 = vmatmul.mubr.bf16.gmra.mrb[0].mxu0 %v771
    %v807 = vpop.f32.mrb[0].mxu0
    %v808 = vadd.f32 0.0, %v807
    %v809 = vpop.f32.mrb[0].mxu0
    %v810 = vpop.f32.mrb[0].mxu0
    %v811 = vpop.f32.mrb[0].mxu0
    %812 = vdwg.mxu0
    %v813 = vadd.f32 %v765, %v808
    %v814 = vxor.u32 %v813, 2147483648
    %v815 = vmul.f32 %v814, 1.442695
    %v816 = vpow.pop %v815
    %v817 = vadd.f32 %v816, 1.0
    %v818 = vrcp.pop %v817
    %v819 = vmul.f32 1.0, %v818
    %v820 = vtanh.pop %v813
    %v821 = vmul.f32 %v819, %v757
    %823 = vrot.lane.b32.xlu0 %v820, 32
    %v824 = vpop.permute.xlu0 %823
    %v826 = vmul.f32 %v819, %v824
    %828 = vrot.lane.b32.xlu0 %v826, 32
    %v829 = vpop.permute.xlu0 %828
    %v831 = vadd.f32 %v821, %v829
    %v832 = vtanh.pop %v831
    %834 = vrot.lane.b32.xlu0 %v832, 32
    %v835 = vpop.permute.xlu0 %834
    %v837 = vmul.f32 %v819, %v835
    %s838 = scalar_lea.vmem [#allocation2], 48
    %v839 = vld [vmem:[%s838] sm:$0xff]
    %v840 = vpack.c.bf16 %v837, %v837
    %842 = vrot.lane.b32.xlu0 %v840, 64
    %v843 = vpop.permute.xlu0 %842
    %v845 = vsel %vm399, %v843, 0
    %847 = vmatprep.subr.bf16.mxu0 0
    %848 = vmatpush1.bf16.msra.mxu0 %v395
    %849 = vmatprep.subr.bf16.mxu0 0
    %850 = vmatpush1.bf16.msra.mxu0 %v396
    %851 = vmatprep.subr.bf16.mxu0 0
    %852 = vmatpush1.bf16.msra.mxu0 0
    %853 = vmatprep.subr.bf16.mxu0 0
    %854 = vmatpush1.bf16.msra.mxu0 0
    %855 = vmatprep.subr.bf16.mxu0 0
    %856 = vmatpush1.bf16.msra.mxu0 0
    %857 = vmatprep.subr.bf16.mxu0 0
    %858 = vmatpush1.bf16.msra.mxu0 0
    %859 = vmatprep.subr.bf16.mxu0 0
    %860 = vmatpush1.bf16.msra.mxu0 0
    %861 = vmatprep.subr.bf16.mxu0 0
    %862 = vmatpush1.bf16.msra.mxu0 0
    %863 = vmatprep.subr.bf16.mxu0 0
    %864 = vmatpush1.bf16.msra.mxu0 0
    %865 = vmatprep.subr.bf16.mxu0 0
    %866 = vmatpush1.bf16.msra.mxu0 0
    %867 = vmatprep.subr.bf16.mxu0 0
    %868 = vmatpush1.bf16.msra.mxu0 0
    %869 = vmatprep.subr.bf16.mxu0 0
    %870 = vmatpush1.bf16.msra.mxu0 0
    %871 = vmatprep.subr.bf16.mxu0 0
    %872 = vmatpush1.bf16.msra.mxu0 0
    %873 = vmatprep.subr.bf16.mxu0 0
    %874 = vmatpush1.bf16.msra.mxu0 0
    %875 = vmatprep.subr.bf16.mxu0 0
    %876 = vmatpush1.bf16.msra.mxu0 0
    %877 = vmatprep.subr.bf16.mxu0 0
    %878 = vmatpush1.bf16.msra.mxu0 0
    %879 = vmatprep.mubr.bf16.mxu0 0
    %880 = vmatmul.mubr.bf16.gmra.mrb[0].mxu0 %v845
    %v881 = vpop.f32.mrb[0].mxu0
    %v882 = vadd.f32 0.0, %v881
    %v883 = vpop.f32.mrb[0].mxu0
    %v884 = vpop.f32.mrb[0].mxu0
    %v885 = vpop.f32.mrb[0].mxu0
    %886 = vdwg.mxu0
    %v887 = vadd.f32 %v839, %v882
    %v888 = vxor.u32 %v887, 2147483648
    %v889 = vmul.f32 %v888, 1.442695
    %v890 = vpow.pop %v889
    %v891 = vadd.f32 %v890, 1.0
    %v892 = vrcp.pop %v891
    %v893 = vmul.f32 1.0, %v892
    %v894 = vtanh.pop %v887
    %v895 = vmul.f32 %v893, %v831
    %897 = vrot.lane.b32.xlu0 %v894, 32
    %v898 = vpop.permute.xlu0 %897
    %v900 = vmul.f32 %v893, %v898
    %902 = vrot.lane.b32.xlu0 %v900, 32
    %v903 = vpop.permute.xlu0 %902
    %v905 = vadd.f32 %v895, %v903
    %v906 = vtanh.pop %v905
    %908 = vrot.lane.b32.xlu0 %v906, 32
    %v909 = vpop.permute.xlu0 %908
    %v911 = vmul.f32 %v893, %v909
    %s912 = scalar_lea.vmem [#allocation2], 56
    %v913 = vld [vmem:[%s912] sm:$0xff]
    %v914 = vpack.c.bf16 %v911, %v911
    %916 = vrot.lane.b32.xlu0 %v914, 64
    %v917 = vpop.permute.xlu0 %916
    %v919 = vsel %vm399, %v917, 0
    %921 = vmatprep.subr.bf16.mxu0 0
    %922 = vmatpush1.bf16.msra.mxu0 %v395
    %923 = vmatprep.subr.bf16.mxu0 0
    %924 = vmatpush1.bf16.msra.mxu0 %v396
    %925 = vmatprep.subr.bf16.mxu0 0
    %926 = vmatpush1.bf16.msra.mxu0 0
    %927 = vmatprep.subr.bf16.mxu0 0
    %928 = vmatpush1.bf16.msra.mxu0 0
    %929 = vmatprep.subr.bf16.mxu0 0
    %930 = vmatpush1.bf16.msra.mxu0 0
    %931 = vmatprep.subr.bf16.mxu0 0
    %932 = vmatpush1.bf16.msra.mxu0 0
    %933 = vmatprep.subr.bf16.mxu0 0
    %934 = vmatpush1.bf16.msra.mxu0 0
    %935 = vmatprep.subr.bf16.mxu0 0
    %936 = vmatpush1.bf16.msra.mxu0 0
    %937 = vmatprep.subr.bf16.mxu0 0
    %938 = vmatpush1.bf16.msra.mxu0 0
    %939 = vmatprep.subr.bf16.mxu0 0
    %940 = vmatpush1.bf16.msra.mxu0 0
    %941 = vmatprep.subr.bf16.mxu0 0
    %942 = vmatpush1.bf16.msra.mxu0 0
    %943 = vmatprep.subr.bf16.mxu0 0
    %944 = vmatpush1.bf16.msra.mxu0 0
    %945 = vmatprep.subr.bf16.mxu0 0
    %946 = vmatpush1.bf16.msra.mxu0 0
    %947 = vmatprep.subr.bf16.mxu0 0
    %948 = vmatpush1.bf16.msra.mxu0 0
    %949 = vmatprep.subr.bf16.mxu0 0
    %950 = vmatpush1.bf16.msra.mxu0 0
    %951 = vmatprep.subr.bf16.mxu0 0
    %952 = vmatpush1.bf16.msra.mxu0 0
    %953 = vmatprep.mubr.bf16.mxu0 0
    %954 = vmatmul.mubr.bf16.gmra.mrb[0].mxu0 %v919
    %v955 = vpop.f32.mrb[0].mxu0
    %v956 = vadd.f32 0.0, %v955
    %v957 = vpop.f32.mrb[0].mxu0
    %v958 = vpop.f32.mrb[0].mxu0
    %v959 = vpop.f32.mrb[0].mxu0
    %960 = vdwg.mxu0
    %v961 = vadd.f32 %v913, %v956
    %v962 = vxor.u32 %v961, 2147483648
    %v963 = vmul.f32 %v962, 1.442695
    %v964 = vpow.pop %v963
    %v965 = vadd.f32 %v964, 1.0
    %v966 = vrcp.pop %v965
    %v967 = vmul.f32 1.0, %v966
    %v968 = vtanh.pop %v961
    %v969 = vmul.f32 %v967, %v905
    %971 = vrot.lane.b32.xlu0 %v968, 32
    %v972 = vpop.permute.xlu0 %971
    %v974 = vmul.f32 %v967, %v972
    %976 = vrot.lane.b32.xlu0 %v974, 32
    %v977 = vpop.permute.xlu0 %976
    %v979 = vadd.f32 %v969, %v977
    %v980 = vtanh.pop %v979
    %982 = vrot.lane.b32.xlu0 %v980, 32
    %v983 = vpop.permute.xlu0 %982
    %v985 = vmul.f32 %v967, %v983
    %v986 = vld [vmem:[%s6] sm:$0x1]
    %v988 = vlaneseq
    %v989 = vshrl.u32 %v988, 7
    %v990 = vsub.s32 0, %v989
    %v991 = vrot.slane %v986, %v990
    %992 = vrot.lane.b32.xlu0 %v991, 64
    %v993 = vpop.permute.xlu0 %992
    %v995 = vmul.f32 %v985, %v993
    %997 = vrot.lane.b32.xlu0 %v995, 64
    %v998 = vpop.permute.xlu0 %997
    %v1000 = vsel %vm399, %v998, 0.0
    %1001 = vadd.xlane.f32.xlu0 %v1000
    %v1002 = vpop.xlane.xlu0 %1001
    %s1003 = sld [smem:[#allocation3]]
    %v1004 = vstv %s1003
    %v1005 = vadd.f32 %v1002, %v1004
    %v1007 = vlaneseq
    %v1008 = vand.u32 %v1007, 127
    %v1009 = vlaneseq
    %v1010 = vshrl.u32 %v1009, 7
    %v1011 = vsub.s32 %v1008, %v1010
    %v1012 = vrot.slane %v1005, %v1011
    %vm1014 = vcmask 57344
    %1015 = vst.msk [vmem:[#allocation7] sm:$0x1] %vm1014, %v1012
    // Predicated region
    $region38: #{tpu_custom_call.1} parent=1 // pred_check
      _
    $region39: #{tpu_custom_call.1} parent=1 // pred_check_branch
      %1017 = sbr.rel (0) target = $region41
    $region40: #{tpu_custom_call.1} parent=1 // pred_region
      %s1019 = ssub.s32 16, 16
      %1020 = vsyncadd [#allocation6], %s1019
      %s1022 = sshll.u32 [#allocation7], 4
      %s1023 = int_to_ptr.vmem [resolvable:$true] %s1022
      %1025 = dma.vmem_to_hbm [thread:$0]  %s1023, 16, %s8, [#allocation6]
    $region41: #{tpu_custom_call.1} parent=1 // pred_fallthru
      _
    // Predicated region
    $region42: #{tpu_custom_call.1} parent=1 // pred_check
      _
    $region43: #{tpu_custom_call.1} parent=1 // pred_check_branch
      %1027 = sbr.rel (0) target = $region45
    $region44: #{tpu_custom_call.1} parent=1 // pred_region
      %1028 = dma.done [#allocation6], 16
    $region45: #{tpu_custom_call.1} parent=1 // pred_fallthru
      _
    %1029 = vsyncpa [#allocation5], 1
    %1030 = vsyncpa [#allocation6], 1

</llo_original>
